<compile_context>
chip_gen: v6e
topology: v6e:2x2x1
jax: 0.10.0
libtpu: 0.0.40
codegen_flags: <defaults>
</compile_context>

<pallas_src>
import math

import jax
import jax.numpy as jnp
from jax.experimental import pallas as pl
from jax.experimental.pallas import tpu as pltpu


# ---------------------------------------------------------------------------
# Pallas kernels
# ---------------------------------------------------------------------------
def _quanconv_kernel_resident(a_ref, w_ref, b_ref, s_ref, o_ref):
    # a_ref: (tm, Kpad)      bf16 integer activation levels
    # w_ref: (Kpad, OCpad)   bf16 integer weight levels (resident, constant index_map)
    # b_ref: (1, OCpad)      f32 pre-scaled bias (resident)
    # s_ref: (1, 1)          f32 combined output scale, in SMEM
    # o_ref: (tm, OCpad)     f32 output tile (lane-dense)
    acc = jnp.dot(a_ref[...], w_ref[...], preferred_element_type=jnp.float32)
    o_ref[...] = (acc * s_ref[0, 0] + b_ref[...]).astype(o_ref.dtype)


def _quanconv_kernel_ktiled(a_ref, w_ref, b_ref, s_ref, o_ref, acc_ref):
    # a_ref: (tm, tk) bf16, w_ref: (tk, tn) bf16, b_ref: (1, tn) f32,
    # s_ref: (1, 1) f32 SMEM, o_ref: (tm, tn) f32, acc_ref: (tm, tn) f32 scratch
    k = pl.program_id(2)

    @pl.when(k == 0)
    def _():
        acc_ref[...] = jnp.zeros_like(acc_ref)

    acc_ref[...] += jnp.dot(a_ref[...], w_ref[...],
                            preferred_element_type=jnp.float32)

    @pl.when(k == pl.num_programs(2) - 1)
    def _():
        o_ref[...] = (acc_ref[...] * s_ref[0, 0] + b_ref[...]).astype(o_ref.dtype)


# ---------------------------------------------------------------------------
# Parameter-prep glue (plain JAX)
# ---------------------------------------------------------------------------
def dorefa_quantize_weight(weight, nbit_w):
    """Reference DoReFaW (returns the real-valued quantized weight)."""
    w = jnp.tanh(weight)
    maxv = jnp.max(jnp.abs(w))
    w = w / (2.0 * maxv) + 0.5
    scale = 2.0 ** nbit_w - 1.0
    w = jnp.round(scale * w) / scale
    return 2.0 * w - 1.0


def _dorefa_weight_int_levels(weight, nbit_w):
    """Integer DoReFaW levels: w_int in [-(2^nbit-1), 2^nbit-1], w_q = w_int / s."""
    s = 2.0 ** nbit_w - 1.0
    w = jnp.tanh(weight)
    maxv = jnp.max(jnp.abs(w))
    w = w / (2.0 * maxv) + 0.5
    w_int = 2.0 * jnp.round(s * w) - s      # exact integers (f32)
    return w_int, w_int / s


def _im2col_nchw(x, kh, kw, stride, padding, dilation):
    """Extract conv patches. Returns (N*OH*OW, C*KH*KW) with C slowest (dtype of x)."""
    n, c, h, w = x.shape
    xp = jnp.pad(x, ((0, 0), (0, 0), (padding, padding), (padding, padding)))
    oh = (h + 2 * padding - dilation * (kh - 1) - 1) // stride + 1
    ow = (w + 2 * padding - dilation * (kw - 1) - 1) // stride + 1
    cols = []
    for i in range(kh):
        for j in range(kw):
            patch = xp[:, :,
                       i * dilation: i * dilation + (oh - 1) * stride + 1: stride,
                       j * dilation: j * dilation + (ow - 1) * stride + 1: stride]
            cols.append(patch)  # (N, C, OH, OW)
    col = jnp.stack(cols, axis=2)                  # (N, C, KH*KW, OH, OW)
    col = col.reshape(n, c * kh * kw, oh, ow)       # C slowest, then KH, KW
    col = col.transpose(0, 2, 3, 1).reshape(n * oh * ow, c * kh * kw)
    return col, oh, ow


def _round_up(x, m):
    return ((x + m - 1) // m) * m


def _vmem_budget_bytes():
    """Generation-aware VMEM budget for the pipelined working set."""
    cap = 128 << 20
    try:
        info = pltpu.get_tpu_info()
        cap = int(getattr(info, "vmem_capacity_bytes", cap)) or cap
    except Exception:
        pass
    # ~5/8 of physical (v7x 64MiB -> 40MiB), never more than 48MiB on 128MiB chips.
    return int(min(48 << 20, (cap * 5) // 8))


def _plan_tiles(m, k_pad, oc, vmem_budget):
    """Pick the execution plan: weight-resident 1-D grid, or K-tiled 3-D grid."""
    slack = 4 << 20
    oc_pad128 = _round_up(oc, 128)
    m_cap = max(128, _round_up(m, 128))

    # --- Path 1: whole weight resident in VMEM, whole-K activation tile ----------
    def resident_need(tm):
        return (2 * k_pad * oc_pad128 * 2        # weight (bf16, dbl-buffered, conservative)
                + 2 * tm * k_pad * 2             # activation tiles (bf16)
                + 2 * tm * oc_pad128 * 4         # output tiles (f32)
                + 2 * oc_pad128 * 4)             # bias row

    for tm in (1024, 512, 256, 128):
        if tm > m_cap:
            continue
        if resident_need(tm) + slack > vmem_budget:
            continue
        m_pad = _round_up(m, tm)
        # Keep at least 2 parallel grid points so both v7x TensorCores get work.
        while m_pad // tm < 2 and tm > 128:
            tm //= 2
            m_pad = _round_up(m, tm)
        need = resident_need(tm)
        return dict(mode="resident", tm=tm, m_pad=m_pad, oc_pad=oc_pad128,
                    vmem_limit=int(min(max(need + slack, 16 << 20), vmem_budget)))

    # --- Path 2: K-tiled streaming with an f32 accumulator (deep layers / v7x) ---
    tn = 256 if oc >= 256 else 128
    oc_pad = _round_up(oc, tn)

    def ktiled_need(tm, tk):
        return (2 * tm * tk * 2 + 2 * tk * tn * 2
                + 2 * tm * tn * 4 + tm * tn * 4 + 2 * tn * 4)

    fallback = None
    for tm in (512, 256, 128):
        if tm > m_cap:
            continue
        for tk in (2048, 1024, 512, 256, 128):
            if k_pad % tk != 0:
                continue
            need = ktiled_need(tm, tk)
            if fallback is None:
                fallback = (tm, tk, need)
            if need + slack <= vmem_budget:
                return dict(mode="ktiled", tm=tm, tn=tn, tk=tk,
                            m_pad=_round_up(m, tm), oc_pad=oc_pad,
                            vmem_limit=int(min(max(need + slack, 16 << 20),
                                               vmem_budget)))
    tm, tk, need = fallback
    return dict(mode="ktiled", tm=tm, tn=tn, tk=tk,
                m_pad=_round_up(m, tm), oc_pad=oc_pad,
                vmem_limit=int(max(need + slack, 16 << 20)))


# ---------------------------------------------------------------------------
# QuanConv forward (quantized path, curr_bitwidth < 32)
# ---------------------------------------------------------------------------
def quanconv_forward(x, weight, bias, *, nbit, stride=1, padding=0, dilation=1,
                     groups=1, weight_sat_scaling=True):
    assert groups == 1, "only groups=1 implemented"  # TODO(synk): grouped conv
    assert 2 <= nbit <= 8, "bf16 integer-level path is exact only for nbit <= 8"
    oc, c_in, kh, kw = weight.shape
    n = x.shape[0]
    s = 2.0 ** nbit - 1.0

    # --- DoReFaW weight quantization as exact integer levels (parameter prep) ---
    w_int, w_q = _dorefa_weight_int_levels(weight, nbit)

    out_scale = jnp.asarray(1.0 / (s * s), jnp.float32)     # undoes the two 1/s factors
    b_q = bias if bias is not None else jnp.zeros((oc,), jnp.float32)
    if weight_sat_scaling:
        std = jnp.maximum(jnp.std(w_q, ddof=1), 1e-12)       # guard degenerate weights
        weight_scale = (1.0 / math.sqrt(oc * kh * kw)) / std
        out_scale = out_scale * weight_scale
        b_q = b_q * weight_scale

    # --- DoReFaA: exact integer activation levels, once per input element, bf16 ---
    x_int = jnp.round(s * jnp.clip(x, 0.0, 1.0)).astype(jnp.bfloat16)

    # --- im2col (glue) on the bf16 integer levels ---
    patches, oh, ow = _im2col_nchw(x_int, kh, kw, stride, padding, dilation)
    m, k = patches.shape
    k_pad = _round_up(k, 128)

    plan = _plan_tiles(m, k_pad, oc, _vmem_budget_bytes())
    m_pad, oc_pad = plan["m_pad"], plan["oc_pad"]

    w_flat = w_int.reshape(oc, k).T.astype(jnp.bfloat16)
    a_mat = jnp.pad(patches, ((0, m_pad - m), (0, k_pad - k)))
    w_mat = jnp.pad(w_flat, ((0, k_pad - k), (0, oc_pad - oc)))
    b_mat = jnp.pad(b_q.reshape(1, oc).astype(jnp.float32), ((0, 0), (0, oc_pad - oc)))
    s_mat = jnp.asarray(out_scale, jnp.float32).reshape(1, 1)

    smem_spec = pl.BlockSpec(memory_space=pltpu.MemorySpace.SMEM)

    if plan["mode"] == "resident":
        tm = plan["tm"]
        out_flat = pl.pallas_call(
            _quanconv_kernel_resident,
            out_shape=jax.ShapeDtypeStruct((m_pad, oc_pad), jnp.float32),
            grid_spec=pltpu.PrefetchScalarGridSpec(
                num_scalar_prefetch=0,
                grid=(m_pad // tm,),
                in_specs=[
                    pl.BlockSpec((tm, k_pad), lambda i: (i, 0)),      # activation tile
                    pl.BlockSpec((k_pad, oc_pad), lambda i: (0, 0)),  # weight, resident
                    pl.BlockSpec((1, oc_pad), lambda i: (0, 0)),      # bias, resident
                    smem_spec,                                        # scale (SMEM scalar)
                ],
                out_specs=pl.BlockSpec((tm, oc_pad), lambda i: (i, 0)),
            ),
            compiler_params=pltpu.CompilerParams(
                dimension_semantics=("parallel",),
                vmem_limit_bytes=plan["vmem_limit"]),
        )(a_mat, w_mat, b_mat, s_mat)
    else:
        tm, tn, tk = plan["tm"], plan["tn"], plan["tk"]
        out_flat = pl.pallas_call(
            _quanconv_kernel_ktiled,
            out_shape=jax.ShapeDtypeStruct((m_pad, oc_pad), jnp.float32),
            grid_spec=pltpu.PrefetchScalarGridSpec(
                num_scalar_prefetch=0,
                grid=(m_pad // tm, oc_pad // tn, k_pad // tk),
                in_specs=[
                    pl.BlockSpec((tm, tk), lambda i, j, kk: (i, kk)),
                    pl.BlockSpec((tk, tn), lambda i, j, kk: (kk, j)),
                    pl.BlockSpec((1, tn), lambda i, j, kk: (0, j)),
                    smem_spec,
                ],
                out_specs=pl.BlockSpec((tm, tn), lambda i, j, kk: (i, j)),
                scratch_shapes=[pltpu.VMEM((tm, tn), jnp.float32)],
            ),
            compiler_params=pltpu.CompilerParams(
                dimension_semantics=("parallel", "parallel", "arbitrary"),
                vmem_limit_bytes=plan["vmem_limit"]),
        )(a_mat, w_mat, b_mat, s_mat)

    # Slice off padding, (N*OH*OW, OC) -> NCHW to match the PyTorch module's output.
    out_flat = out_flat[:m, :oc]
    return out_flat.reshape(n, oh, ow, oc).transpose(0, 3, 1, 2)


# ---------------------------------------------------------------------------
# Pure-JAX reference for validation
# ---------------------------------------------------------------------------
def quanconv_reference(x, weight, bias, *, nbit, stride, padding, dilation):
    oc, _, kh, kw = weight.shape
    w_q = dorefa_quantize_weight(weight, nbit)
    ws = (1.0 / math.sqrt(oc * kh * kw)) / jnp.std(w_q, ddof=1)
    w_q = w_q * ws
    b_q = bias * ws
    scale = 2.0 ** nbit - 1.0
    x_q = jnp.round(scale * jnp.clip(x, 0.0, 1.0)) / scale
    out = jax.lax.conv_general_dilated(
        x_q, w_q, window_strides=(stride, stride),
        padding=[(padding, padding), (padding, padding)],
        rhs_dilation=(dilation, dilation),
        dimension_numbers=("NCHW", "OIHW", "NCHW"))
    return out + b_q[None, :, None, None]


if __name__ == "__main__":
    # Small QuanConv config: in=4, out=8, kernel=(3,3), stride=1, pad=1, nbit=4
    N, C, H, W = 2, 4, 16, 16
    OC, KH, KW = 8, 3, 3
    stride, padding, dilation = 1, 1, 1
    nbit = 4

    key = jax.random.PRNGKey(0)
    k_w, k_x = jax.random.split(key)

    # kaiming_uniform_(mode='fan_out', nonlinearity='relu'):
    # bound = sqrt(2) * sqrt(3 / fan_out), fan_out = OC*KH*KW
    fan_out = OC * KH * KW
    bound = math.sqrt(2.0) * math.sqrt(3.0 / fan_out)
    weight = jax.random.uniform(k_w, (OC, C, KH, KW), jnp.float32,
                                minval=-bound, maxval=bound)
    bias = jnp.zeros((OC,), jnp.float32)  # module inits bias to zeros

    # Input covering the clamp range of DoReFaA
    x = jax.random.uniform(k_x, (N, C, H, W), jnp.float32, minval=-0.5, maxval=1.5)

    out = quanconv_forward(x, weight, bias, nbit=nbit, stride=stride,
                           padding=padding, dilation=dilation)
    out = jax.block_until_ready(out)

    ref = quanconv_reference(x, weight, bias, nbit=nbit, stride=stride,
                             padding=padding, dilation=dilation)
    ref = jax.block_until_ready(ref)

    assert out.shape == (N, OC, H, W), out.shape
    assert jnp.allclose(out, ref, rtol=1e-4, atol=1e-4), \
        f"max abs err = {jnp.max(jnp.abs(out - ref))}"
    print("KERNEL_OK")
</pallas_src>

<mosaic_0001>
module attributes {stable_mosaic.version = 11 : i64} {
  func.func @_quanconv_kernel_resident(%arg0: i32, %arg1: memref<256x128xbf16, #tpu.memory_space<vmem>>, %arg2: memref<128x128xbf16, #tpu.memory_space<vmem>>, %arg3: memref<1x128xf32, #tpu.memory_space<vmem>>, %arg4: memref<1x1xf32, #tpu.memory_space<smem>>, %arg5: memref<256x128xf32, #tpu.memory_space<vmem>>) attributes {dimension_semantics = [#tpu.dimension_semantics<parallel>], iteration_bounds = array<i64: 2>, scalar_prefetch = 0 : i64, scratch_operands = 0 : i64, tpu.core_type = #tpu.core_type<tc>, window_params = [{transform_indices = @transform_0, window_bounds = array<i64: 256, 128>}, {pipeline_mode = #tpu.pipeline_mode<synchronous>, transform_indices = @transform_1, window_bounds = array<i64: 128, 128>}, {pipeline_mode = #tpu.pipeline_mode<synchronous>, transform_indices = @transform_2, window_bounds = array<i64: 1, 128>}, {transform_indices = @transform_3, window_bounds = array<i64: 1, 1>}, {transform_indices = @transform_4, window_bounds = array<i64: 256, 128>}]} {
    %c0 = arith.constant 0 : index
    %c0_0 = arith.constant 0 : index
    %0 = vector.load %arg1[%c0, %c0_0] : memref<256x128xbf16, #tpu.memory_space<vmem>>, vector<256x128xbf16>
    %c0_1 = arith.constant 0 : index
    %c0_2 = arith.constant 0 : index
    %1 = vector.load %arg2[%c0_1, %c0_2] : memref<128x128xbf16, #tpu.memory_space<vmem>>, vector<128x128xbf16>
    %cst = arith.constant dense<0.000000e+00> : vector<256x128xf32>
    %2 = tpu.matmul %0, %1, %cst {dimension_numbers = #tpu.dot_dimension_numbers<[1], [0], [0], [1], [0, 0, 1, 1], [], []>} : vector<256x128xbf16>, vector<128x128xbf16>, vector<256x128xf32> -> vector<256x128xf32>
    %c0_3 = arith.constant 0 : index
    %c0_4 = arith.constant 0 : index
    %3 = memref.load %arg4[%c0_3, %c0_4] : memref<1x1xf32, #tpu.memory_space<smem>>
    %4 = vector.broadcast %3 : f32 to vector<256x128xf32>
    %5 = arith.mulf %2, %4 : vector<256x128xf32>
    %c0_5 = arith.constant 0 : index
    %c0_6 = arith.constant 0 : index
    %6 = vector.load %arg3[%c0_5, %c0_6] : memref<1x128xf32, #tpu.memory_space<vmem>>, vector<1x128xf32>
    %7 = vector.broadcast %6 : vector<1x128xf32> to vector<256x128xf32>
    %8 = arith.addf %5, %7 : vector<256x128xf32>
    %c0_7 = arith.constant 0 : index
    %c0_8 = arith.constant 0 : index
    %9 = vector.load %arg5[%c0_7, %c0_8] : memref<256x128xf32, #tpu.memory_space<vmem>>, vector<256x128xf32>
    tpu.vector_store %arg5[%c0_7, %c0_8], %8 {strides = array<i32>} : memref<256x128xf32, #tpu.memory_space<vmem>>, vector<256x128xf32>,
    return
  }
  func.func @transform_0(%arg0: i32) -> (i32, i32) {
    %c0_i32 = arith.constant 0 : i32
    %c0_i32_0 = arith.constant 0 : i32
    return %arg0, %c0_i32 : i32, i32
  }
  func.func @transform_1(%arg0: i32) -> (i32, i32) {
    %c0_i32 = arith.constant 0 : i32
    %c0_i32_0 = arith.constant 0 : i32
    %c0_i32_1 = arith.constant 0 : i32
    return %c0_i32, %c0_i32_0 : i32, i32
  }
  func.func @transform_2(%arg0: i32) -> (i32, i32) {
    %c0_i32 = arith.constant 0 : i32
    %c0_i32_0 = arith.constant 0 : i32
    %c0_i32_1 = arith.constant 0 : i32
    return %c0_i32, %c0_i32_0 : i32, i32
  }
  func.func @transform_3(%arg0: i32) -> (i32, i32) {
    %c0_i32 = arith.constant 0 : i32
    %c0_i32_0 = arith.constant 0 : i32
    %c0_i32_1 = arith.constant 0 : i32
    return %c0_i32, %c0_i32_0 : i32, i32
  }
  func.func @transform_4(%arg0: i32) -> (i32, i32) {
    %c0_i32 = arith.constant 0 : i32
    %c0_i32_0 = arith.constant 0 : i32
    return %arg0, %c0_i32 : i32, i32
  }
}

</mosaic_0001>

<llo_original>
// kernel: tpu_custom_call.1
$region0: #{tpu_custom_call.1}
  #allocation0 [shape = 'u32[]', space=smem, size = 0x4, offset = 0x4, fixed_abs, tag = 'smem constant byte address 0x4 - core index']
  #allocation1 [shape = 'u32[144,128]{1,0:T(1,128)}', space=vmem, size = 0x12000, scoped, tag = 'internal scratch']
  #allocation2 [shape = 'f32[1,1]{1,0:T(1,128)S(6)}', space=smem, size = 0x200, scoped, tag = 'scoped memory for tpu_custom_call.1']
  %s0 = inlined_call_operand.hbm [shape: bf16[512,128], index: 0, kind: input, shape index: {}]
  %s1 = inlined_call_operand.hbm [shape: bf16[128,128], index: 1, kind: input, shape index: {}]
  %s2 = inlined_call_operand.vmem [shape: f32[1,128], index: 2, kind: input, shape index: {}]
  %s3 = inlined_call_operand.<no memory space> [shape: f32[1,1], index: 3, kind: input, shape index: {}]
  %s4 = inlined_call_operand.hbm [shape: f32[512,128], index: 4, kind: output, shape index: {}]
  %s5 = sld [smem:[#allocation0]]
  $region57: #{tpu_custom_call.1} parent=0
    _
  %s7 = ssub.s32 1, %s5
  %s8 = scalar_select 0, %s7, %s5
  %9 = sst [smem:[#allocation2]] %s3
  $region1: #{tpu_custom_call.1} parent=0
    #allocation3 [shape = 'u8[131072]{0}', space=vmem, size = 0x20000, scoped, tag = 'input window, operand 0']
    #allocation4 [shape = 's32[2]{0}', space=sflag, size = 0x8, scoped, tag = 'scoped memory for tpu_custom_call.1']
    #allocation5 [shape = 's32[2]{0}', space=sflag, size = 0x8, scoped, tag = 'scoped memory for tpu_custom_call.1']
    #allocation6 [shape = 'u8[32768]{0}', space=vmem, size = 0x8000, scoped, tag = 'input window, operand 1, single buffered']
    #allocation7 [shape = 's32[1]{0}', space=sflag, size = 0x4, scoped, tag = 'scoped memory for tpu_custom_call.1']
    #allocation8 [shape = 'u8[262144]{0}', space=vmem, size = 0x40000, scoped, tag = 'output window, operand 0']
    %10 = vsyncpa [#allocation4], 0
    %s11 = scalar_lea.sflag [#allocation4], 1
    %12 = vsyncpa %s11, 0
    %13 = vsyncpa [#allocation7], 0
    %14 = vsyncpa [#allocation5], 0
    %s15 = scalar_lea.sflag [#allocation5], 1
    %16 = vsyncpa %s15, 0
    loop: start=0, step=1, limit=4
    $region2: #{tpu_custom_call.1} parent=1 // loop_pre_header
      _
    $region3: #{tpu_custom_call.1} parent=1 // loop_header
      %s18 = sphi 0, %s22
      %p19 = scmp.ge.s32.totalorder %s18, 4
      %s28 = sphi 0, %s30
      %s31 = sphi 0, %s28
      %s32 = sphi 0, %s31
      %s48 = sphi 0, %s32
      %s52 = sphi 0, %s52
      %s54 = sphi 0, %s52
      %s55 = sphi 0, %s54
      %s69 = sphi 0, %s55
      %s73 = sphi 0, %s73
      %s75 = sphi 0, %s73
      %s76 = sphi 0, %s75
      %s90 = sphi 0, %s76
      %s94 = sphi 0, %s94
      %s96 = sphi 0, %s94
      %s97 = sphi 0, %s96
      %s111 = sphi 0, %s97
      %s117 = sphi 0, %s119
      %s120 = sphi 0, %s117
      %s121 = sphi 0, %s120
      %s137 = sphi 0, %s121
    $region4: #{tpu_custom_call.1} parent=1 // loop_header_branch
      %21 = sbr.rel (%p19) target = $region8
    $region5: #{tpu_custom_call.1} parent=1 // loop_body
      %s23 = ssub.s32 %s18, 1
      %s24 = ssub.s32 %s18, 2
      %s25 = sadd.s32 %s18, 1
      %s26 = ssub.s32 %s18, %s25
      %p27 = scmp.eq.s32.totalorder %s26, 0
      %s29 = sadd.s32 %s28, 1
      %s30 = scalar_select %p27, %s28, %s29
      %p33 = pneg %p27
      %p34 = scmp.eq.s32.totalorder %s18, 1
      %p35 = por %p33, %p34
      %p36 = scmp.ne.s32.totalorder %s28, %s31
      %p37 = scmp.eq.s32.totalorder %s18, 0
      %p38 = por %p36, %p37
      %p39 = scmp.ne.s32.totalorder %s28, %s31
      %p40 = scmp.eq.s32.totalorder %s23, 1
      %p41 = por %p39, %p40
      %p42 = scmp.ne.s32.totalorder %s31, %s32
      %p43 = scmp.eq.s32.totalorder %s23, 0
      %p44 = por %p42, %p43
      %p45 = scmp.ne.s32.totalorder %s31, %s32
      %p46 = scmp.eq.s32.totalorder %s24, 1
      %p47 = por %p45, %p46
      %p49 = scmp.ne.s32.totalorder %s32, %s48
      %p50 = scmp.eq.s32.totalorder %s24, 0
      %p51 = por %p49, %p50
      %s53 = sadd.s32 %s52, 1
      %p56 = scmp.eq.s32.totalorder %s18, 1
      %p57 = scmp.ne.s32.totalorder %s52, %s54
      %p58 = scmp.eq.s32.totalorder %s18, 0
      %p59 = por %p57, %p58
      %p60 = scmp.ne.s32.totalorder %s52, %s54
      %p61 = scmp.eq.s32.totalorder %s23, 1
      %p62 = por %p60, %p61
      %p63 = scmp.ne.s32.totalorder %s54, %s55
      %p64 = scmp.eq.s32.totalorder %s23, 0
      %p65 = por %p63, %p64
      %p66 = scmp.ne.s32.totalorder %s54, %s55
      %p67 = scmp.eq.s32.totalorder %s24, 1
      %p68 = por %p66, %p67
      %p70 = scmp.ne.s32.totalorder %s55, %s69
      %p71 = scmp.eq.s32.totalorder %s24, 0
      %p72 = por %p70, %p71
      %s74 = sadd.s32 %s73, 1
      %p77 = scmp.eq.s32.totalorder %s18, 1
      %p78 = scmp.ne.s32.totalorder %s73, %s75
      %p79 = scmp.eq.s32.totalorder %s18, 0
      %p80 = por %p78, %p79
      %p81 = scmp.ne.s32.totalorder %s73, %s75
      %p82 = scmp.eq.s32.totalorder %s23, 1
      %p83 = por %p81, %p82
      %p84 = scmp.ne.s32.totalorder %s75, %s76
      %p85 = scmp.eq.s32.totalorder %s23, 0
      %p86 = por %p84, %p85
      %p87 = scmp.ne.s32.totalorder %s75, %s76
      %p88 = scmp.eq.s32.totalorder %s24, 1
      %p89 = por %p87, %p88
      %p91 = scmp.ne.s32.totalorder %s76, %s90
      %p92 = scmp.eq.s32.totalorder %s24, 0
      %p93 = por %p91, %p92
      %s95 = sadd.s32 %s94, 1
      %p98 = scmp.eq.s32.totalorder %s18, 1
      %p99 = scmp.ne.s32.totalorder %s94, %s96
      %p100 = scmp.eq.s32.totalorder %s18, 0
      %p101 = por %p99, %p100
      %p102 = scmp.ne.s32.totalorder %s94, %s96
      %p103 = scmp.eq.s32.totalorder %s23, 1
      %p104 = por %p102, %p103
      %p105 = scmp.ne.s32.totalorder %s96, %s97
      %p106 = scmp.eq.s32.totalorder %s23, 0
      %p107 = por %p105, %p106
      %p108 = scmp.ne.s32.totalorder %s96, %s97
      %p109 = scmp.eq.s32.totalorder %s24, 1
      %p110 = por %p108, %p109
      %p112 = scmp.ne.s32.totalorder %s97, %s111
      %p113 = scmp.eq.s32.totalorder %s24, 0
      %p114 = por %p112, %p113
      %s115 = ssub.s32 %s18, %s25
      %p116 = scmp.eq.s32.totalorder %s115, 0
      %s118 = sadd.s32 %s117, 1
      %s119 = scalar_select %p116, %s117, %s118
      %p122 = pneg %p116
      %p123 = scmp.eq.s32.totalorder %s18, 1
      %p124 = por %p122, %p123
      %p125 = scmp.ne.s32.totalorder %s117, %s120
      %p126 = scmp.eq.s32.totalorder %s18, 0
      %p127 = por %p125, %p126
      %p128 = scmp.ne.s32.totalorder %s117, %s120
      %p129 = scmp.eq.s32.totalorder %s23, 1
      %p130 = por %p128, %p129
      %p131 = scmp.ne.s32.totalorder %s120, %s121
      %p132 = scmp.eq.s32.totalorder %s23, 0
      %p133 = por %p131, %p132
      %p134 = scmp.ne.s32.totalorder %s120, %s121
      %p135 = scmp.eq.s32.totalorder %s24, 1
      %p136 = por %p134, %p135
      %p138 = scmp.ne.s32.totalorder %s121, %s137
      %p139 = scmp.eq.s32.totalorder %s24, 0
      %p140 = por %p138, %p139
      %p141 = scmp.le.s32.totalorder 1, %s18
      %p142 = scmp.lt.s32.totalorder %s18, 3
      %p143 = pnand %p141, %p142
      %p144 = pneg %p143
      // Predicated region
      $region9: #{tpu_custom_call.1} parent=5 // pred_check
        _
      $region10: #{tpu_custom_call.1} parent=5 // pred_check_branch
        %146 = sbr.rel (%p143) target = $region12
      $region11: #{tpu_custom_call.1} parent=5 // pred_region
        %s147 = ssub.s32 %s18, 1
        // Predicated region
        $region13: #{tpu_custom_call.1} parent=11 // pred_check
          %p148 = pneg %p65
        $region14: #{tpu_custom_call.1} parent=11 // pred_check_branch
          %150 = sbr.rel (%p148) target = $region16
        $region15: #{tpu_custom_call.1} parent=11 // pred_region
          %s152 = ssub.s32 1024, 1024
          %153 = vsyncadd [#allocation7], %s152
          %s154 = sshll.u32 [#allocation6], 4
          %s155 = int_to_ptr.vmem [resolvable:$true] %s154
          %160 = dma.hbm_to_vmem [thread:$0]  %s1, 1024, %s155, [#allocation7], 64, 64, 4
        $region16: #{tpu_custom_call.1} parent=11 // pred_fallthru
          _
        // Predicated region
        $region17: #{tpu_custom_call.1} parent=11 // pred_check
          %p161 = pneg %p86
        $region18: #{tpu_custom_call.1} parent=11 // pred_check_branch
          %163 = sbr.rel (%p161) target = $region20
        $region19: #{tpu_custom_call.1} parent=11 // pred_region
          _
        $region20: #{tpu_custom_call.1} parent=11 // pred_fallthru
          _
        // Predicated region
        $region21: #{tpu_custom_call.1} parent=11 // pred_check
          %p164 = pneg %p107
        $region22: #{tpu_custom_call.1} parent=11 // pred_check_branch
          %166 = sbr.rel (%p164) target = $region24
        $region23: #{tpu_custom_call.1} parent=11 // pred_region
          _
        $region24: #{tpu_custom_call.1} parent=11 // pred_fallthru
          _
      $region12: #{tpu_custom_call.1} parent=5 // pred_fallthru
        _
      %p167 = scmp.lt.s32.totalorder %s18, 2
      // Predicated region
      $region25: #{tpu_custom_call.1} parent=5 // pred_check
        %p168 = pneg %p167
      $region26: #{tpu_custom_call.1} parent=5 // pred_check_branch
        %170 = sbr.rel (%p168) target = $region28
      $region27: #{tpu_custom_call.1} parent=5 // pred_region
        // Predicated region
        $region29: #{tpu_custom_call.1} parent=27 // pred_check
          %p171 = pneg %p38
        $region30: #{tpu_custom_call.1} parent=27 // pred_check_branch
          %173 = sbr.rel (%p171) target = $region32
        $region31: #{tpu_custom_call.1} parent=27 // pred_region
          %s174 = sand.u32 %s28, 1
          %s175 = scalar_lea.sflag [#allocation4], %s174
          %s176 = sand.u32 %s28, 1
          %s177 = smul.addr %s176, 128
          %s178 = scalar_lea.vmem [#allocation3], %s177
          %s179 = smul.u32 32, %s18
          %s181 = ssub.s32 2048, 2048
          %182 = vsyncadd %s175, %s181
          %s183 = smul.addr %s179, 64
          %s184 = scalar_lea.hbm %s0, %s183
          %s185 = sshll.u32 %s178, 4
          %s186 = int_to_ptr.vmem [resolvable:$true] %s185
          %191 = dma.hbm_to_vmem [thread:$0]  %s184, 2048, %s186, %s175, 64, 64, 4
        $region32: #{tpu_custom_call.1} parent=27 // pred_fallthru
          _
      $region28: #{tpu_custom_call.1} parent=5 // pred_fallthru
        _
      %p192 = scmp.le.s32.totalorder 1, %s18
      %p193 = scmp.lt.s32.totalorder %s18, 3
      %p194 = pnand %p192, %p193
      %p195 = pneg %p194
      // Predicated region
      $region33: #{tpu_custom_call.1} parent=5 // pred_check
        _
      $region34: #{tpu_custom_call.1} parent=5 // pred_check_branch
        %197 = sbr.rel (%p194) target = $region36
      $region35: #{tpu_custom_call.1} parent=5 // pred_region
        %s198 = ssub.s32 %s18, 1
        %s199 = sand.u32 %s31, 1
        %s200 = scalar_lea.sflag [#allocation4], %s199
        %s201 = sand.u32 %s31, 1
        %s202 = smul.addr %s201, 128
        %s203 = scalar_lea.vmem [#allocation3], %s202
        // Predicated region
        $region37: #{tpu_custom_call.1} parent=35 // pred_check
          %p204 = pneg %p44
        $region38: #{tpu_custom_call.1} parent=35 // pred_check_branch
          %206 = sbr.rel (%p204) target = $region40
        $region39: #{tpu_custom_call.1} parent=35 // pred_region
          %207 = dma.done %s200, 2048
        $region40: #{tpu_custom_call.1} parent=35 // pred_fallthru
          _
        // Predicated region
        $region41: #{tpu_custom_call.1} parent=35 // pred_check
          %p208 = pneg %p65
        $region42: #{tpu_custom_call.1} parent=35 // pred_check_branch
          %210 = sbr.rel (%p208) target = $region44
        $region43: #{tpu_custom_call.1} parent=35 // pred_region
          %211 = dma.done [#allocation7], 1024
        $region44: #{tpu_custom_call.1} parent=35 // pred_fallthru
          _
        %s212 = sand.u32 %s31, 1
        %s213 = scalar_lea.sflag [#allocation4], %s212
        %s214 = sand.u32 %s31, 1
        %s215 = smul.addr %s214, 128
        %s216 = scalar_lea.vmem [#allocation3], %s215
        %p217 = pneg %p44
        %p218 = pneg %p41
        %p219 = pneg %p65
        %p220 = pneg %p62
        %p221 = pneg %p86
        %p222 = pneg %p83
        %p223 = pneg %p107
        %p224 = pneg %p104
        %p225 = pneg %p133
        %p226 = pneg %p130
        %s227 = sand.u32 %s120, 1
        %s228 = scalar_lea.sflag [#allocation5], %s227
        %s229 = sand.u32 %s120, 1
        %s230 = smul.addr %s229, 256
        %s231 = scalar_lea.vmem [#allocation8], %s230
        %s232 = smul.u32 32, %s23
        %s233 = smul.u32 32, %s23
        %v235 = vld [vmem:[%s203] sm:$0xf]
        %v236 = vld [vmem:[%s203 + $0x4] sm:$0xf]
        %v237 = vld [vmem:[%s203 + $0x8] sm:$0xf]
        %v238 = vld [vmem:[%s203 + $0xc] sm:$0xf]
        %v239 = vld [vmem:[%s203 + $0x10] sm:$0xf]
        %v240 = vld [vmem:[%s203 + $0x14] sm:$0xf]
        %v241 = vld [vmem:[%s203 + $0x18] sm:$0xf]
        %v242 = vld [vmem:[%s203 + $0x1c] sm:$0xf]
        %v243 = vld [vmem:[%s203 + $0x20] sm:$0xf]
        %v244 = vld [vmem:[%s203 + $0x24] sm:$0xf]
        %v245 = vld [vmem:[%s203 + $0x28] sm:$0xf]
        %v246 = vld [vmem:[%s203 + $0x2c] sm:$0xf]
        %v247 = vld [vmem:[%s203 + $0x30] sm:$0xf]
        %v248 = vld [vmem:[%s203 + $0x34] sm:$0xf]
        %v249 = vld [vmem:[%s203 + $0x38] sm:$0xf]
        %v250 = vld [vmem:[%s203 + $0x3c] sm:$0xf]
        %v251 = vld [vmem:[%s203 + $0x40] sm:$0xf]
        %v252 = vld [vmem:[%s203 + $0x44] sm:$0xf]
        %v253 = vld [vmem:[%s203 + $0x48] sm:$0xf]
        %v254 = vld [vmem:[%s203 + $0x4c] sm:$0xf]
        %v255 = vld [vmem:[%s203 + $0x50] sm:$0xf]
        %v256 = vld [vmem:[%s203 + $0x54] sm:$0xf]
        %v257 = vld [vmem:[%s203 + $0x58] sm:$0xf]
        %v258 = vld [vmem:[%s203 + $0x5c] sm:$0xf]
        %v259 = vld [vmem:[%s203 + $0x60] sm:$0xf]
        %v260 = vld [vmem:[%s203 + $0x64] sm:$0xf]
        %v261 = vld [vmem:[%s203 + $0x68] sm:$0xf]
        %v262 = vld [vmem:[%s203 + $0x6c] sm:$0xf]
        %v263 = vld [vmem:[%s203 + $0x70] sm:$0xf]
        %v264 = vld [vmem:[%s203 + $0x74] sm:$0xf]
        %v265 = vld [vmem:[%s203 + $0x78] sm:$0xf]
        %v266 = vld [vmem:[%s203 + $0x7c] sm:$0xf]
        %v267 = vld [vmem:[#allocation6] sm:$0xf]
        %v268 = vld [vmem:[#allocation6 + $0x4] sm:$0xf]
        %v269 = vld [vmem:[#allocation6 + $0x8] sm:$0xf]
        %v270 = vld [vmem:[#allocation6 + $0xc] sm:$0xf]
        %v271 = vld [vmem:[#allocation6 + $0x10] sm:$0xf]
        %v272 = vld [vmem:[#allocation6 + $0x14] sm:$0xf]
        %v273 = vld [vmem:[#allocation6 + $0x18] sm:$0xf]
        %v274 = vld [vmem:[#allocation6 + $0x1c] sm:$0xf]
        %v275 = vld [vmem:[#allocation6 + $0x20] sm:$0xf]
        %v276 = vld [vmem:[#allocation6 + $0x24] sm:$0xf]
        %v277 = vld [vmem:[#allocation6 + $0x28] sm:$0xf]
        %v278 = vld [vmem:[#allocation6 + $0x2c] sm:$0xf]
        %v279 = vld [vmem:[#allocation6 + $0x30] sm:$0xf]
        %v280 = vld [vmem:[#allocation6 + $0x34] sm:$0xf]
        %v281 = vld [vmem:[#allocation6 + $0x38] sm:$0xf]
        %v282 = vld [vmem:[#allocation6 + $0x3c] sm:$0xf]
        %v315 = vunpack.c.l.b16 %v235
        %v316 = vunpack.c.l.b16 %v236
        %v317 = vunpack.c.l.b16 %v237
        %v318 = vunpack.c.l.b16 %v238
        %v319 = vunpack.c.l.b16 %v239
        %v320 = vunpack.c.l.b16 %v240
        %v321 = vunpack.c.l.b16 %v241
        %v322 = vunpack.c.l.b16 %v242
        %v323 = vunpack.c.l.b16 %v243
        %v324 = vunpack.c.l.b16 %v244
        %v325 = vunpack.c.l.b16 %v245
        %v326 = vunpack.c.l.b16 %v246
        %v327 = vunpack.c.l.b16 %v247
        %v328 = vunpack.c.l.b16 %v248
        %v329 = vunpack.c.l.b16 %v249
        %v330 = vunpack.c.l.b16 %v250
        %v331 = vunpack.c.l.b16 %v251
        %v332 = vunpack.c.l.b16 %v252
        %v333 = vunpack.c.l.b16 %v253
        %v334 = vunpack.c.l.b16 %v254
        %v335 = vunpack.c.l.b16 %v255
        %v336 = vunpack.c.l.b16 %v256
        %v337 = vunpack.c.l.b16 %v257
        %v338 = vunpack.c.l.b16 %v258
        %v339 = vunpack.c.l.b16 %v259
        %v340 = vunpack.c.l.b16 %v260
        %v341 = vunpack.c.l.b16 %v261
        %v342 = vunpack.c.l.b16 %v262
        %v343 = vunpack.c.l.b16 %v263
        %v344 = vunpack.c.l.b16 %v264
        %v345 = vunpack.c.l.b16 %v265
        %v346 = vunpack.c.l.b16 %v266
        %v347 = vpack.c.b16 %v316, %v315
        %v348 = vpack.c.b16 %v318, %v317
        %v349 = vpack.c.b16 %v320, %v319
        %v350 = vpack.c.b16 %v322, %v321
        %v351 = vpack.c.b16 %v324, %v323
        %v352 = vpack.c.b16 %v326, %v325
        %v353 = vpack.c.b16 %v328, %v327
        %v354 = vpack.c.b16 %v330, %v329
        %v355 = vpack.c.b16 %v332, %v331
        %v356 = vpack.c.b16 %v334, %v333
        %v357 = vpack.c.b16 %v336, %v335
        %v358 = vpack.c.b16 %v338, %v337
        %v359 = vpack.c.b16 %v340, %v339
        %v360 = vpack.c.b16 %v342, %v341
        %v361 = vpack.c.b16 %v344, %v343
        %v362 = vpack.c.b16 %v346, %v345
        %v395 = vunpack.c.l.b16 %v267
        %v396 = vunpack.c.l.b16 %v268
        %v397 = vunpack.c.l.b16 %v269
        %v398 = vunpack.c.l.b16 %v270
        %v399 = vunpack.c.l.b16 %v271
        %v400 = vunpack.c.l.b16 %v272
        %v401 = vunpack.c.l.b16 %v273
        %v402 = vunpack.c.l.b16 %v274
        %v403 = vunpack.c.l.b16 %v275
        %v404 = vunpack.c.l.b16 %v276
        %v405 = vunpack.c.l.b16 %v277
        %v406 = vunpack.c.l.b16 %v278
        %v407 = vunpack.c.l.b16 %v279
        %v408 = vunpack.c.l.b16 %v280
        %v409 = vunpack.c.l.b16 %v281
        %v410 = vunpack.c.l.b16 %v282
        %v411 = vpack.c.b16 %v396, %v395
        %v412 = vpack.c.b16 %v398, %v397
        %v413 = vpack.c.b16 %v400, %v399
        %v414 = vpack.c.b16 %v402, %v401
        %v415 = vpack.c.b16 %v404, %v403
        %v416 = vpack.c.b16 %v406, %v405
        %v417 = vpack.c.b16 %v408, %v407
        %v418 = vpack.c.b16 %v410, %v409
        %427 = vmatprep.subr.bf16.mxu0 0
        %428 = vmatpush1.bf16.msra.mxu0 %v418
        %429 = vmatprep.subr.bf16.mxu0 0
        %430 = vmatpush1.bf16.msra.mxu0 %v417
        %431 = vmatprep.subr.bf16.mxu0 0
        %432 = vmatpush1.bf16.msra.mxu0 %v416
        %433 = vmatprep.subr.bf16.mxu0 0
        %434 = vmatpush1.bf16.msra.mxu0 %v415
        %435 = vmatprep.subr.bf16.mxu0 0
        %436 = vmatpush1.bf16.msra.mxu0 %v414
        %437 = vmatprep.subr.bf16.mxu0 0
        %438 = vmatpush1.bf16.msra.mxu0 %v413
        %439 = vmatprep.subr.bf16.mxu0 0
        %440 = vmatpush1.bf16.msra.mxu0 %v412
        %441 = vmatprep.subr.bf16.mxu0 0
        %442 = vmatpush1.bf16.msra.mxu0 %v411
        %443 = vmatprep.subr.bf16.mxu0 0
        %444 = vmatpush2.bf16.msra.mxu0 0
        %445 = vmatprep.subr.bf16.mxu0 0
        %446 = vmatpush2.bf16.msra.mxu0 0
        %447 = vmatprep.subr.bf16.mxu0 0
        %448 = vmatpush2.bf16.msra.mxu0 0
        %449 = vmatprep.subr.bf16.mxu0 0
        %450 = vmatpush2.bf16.msra.mxu0 0
        %451 = vmatprep.subr.bf16.mxu0 0
        %452 = vmatpush2.bf16.msra.mxu0 0
        %453 = vmatprep.subr.bf16.mxu0 0
        %454 = vmatpush2.bf16.msra.mxu0 0
        %455 = vmatprep.subr.bf16.mxu0 0
        %456 = vmatpush2.bf16.msra.mxu0 0
        %457 = vmatprep.subr.bf16.mxu0 0
        %458 = vmatpush2.bf16.msra.mxu0 0
        %459 = vmatprep.mubr.bf16.mxu0 0
        %460 = vmatmul.mubr.bf16.gmra.mxu0 %v347
        %v461 = vpop.f32.mrf.mxu0
        %v462 = vadd.f32 0.0, %v461
        %v463 = vpop.f32.mrf.mxu0
        %v464 = vpop.f32.mrf.mxu0
        %v465 = vadd.f32 0.0, %v464
        %v466 = vpop.f32.mrf.mxu0
        %467 = vmatprep.mubr.bf16.mxu0 0
        %468 = vmatmul.mubr.bf16.gmra.mxu0 %v348
        %v469 = vpop.f32.mrf.mxu0
        %v470 = vadd.f32 0.0, %v469
        %v471 = vpop.f32.mrf.mxu0
        %v472 = vpop.f32.mrf.mxu0
        %v473 = vadd.f32 0.0, %v472
        %v474 = vpop.f32.mrf.mxu0
        %475 = vmatprep.mubr.bf16.mxu0 0
        %476 = vmatmul.mubr.bf16.gmra.mxu0 %v349
        %v477 = vpop.f32.mrf.mxu0
        %v478 = vadd.f32 0.0, %v477
        %v479 = vpop.f32.mrf.mxu0
        %v480 = vpop.f32.mrf.mxu0
        %v481 = vadd.f32 0.0, %v480
        %v482 = vpop.f32.mrf.mxu0
        %483 = vmatprep.mubr.bf16.mxu0 0
        %484 = vmatmul.mubr.bf16.gmra.mxu0 %v350
        %v485 = vpop.f32.mrf.mxu0
        %v486 = vadd.f32 0.0, %v485
        %v487 = vpop.f32.mrf.mxu0
        %v488 = vpop.f32.mrf.mxu0
        %v489 = vadd.f32 0.0, %v488
        %v490 = vpop.f32.mrf.mxu0
        %491 = vmatprep.mubr.bf16.mxu0 0
        %492 = vmatmul.mubr.bf16.gmra.mxu0 %v351
        %v493 = vpop.f32.mrf.mxu0
        %v494 = vadd.f32 0.0, %v493
        %v495 = vpop.f32.mrf.mxu0
        %v496 = vpop.f32.mrf.mxu0
        %v497 = vadd.f32 0.0, %v496
        %v498 = vpop.f32.mrf.mxu0
        %499 = vmatprep.mubr.bf16.mxu0 0
        %500 = vmatmul.mubr.bf16.gmra.mxu0 %v352
        %v501 = vpop.f32.mrf.mxu0
        %v502 = vadd.f32 0.0, %v501
        %v503 = vpop.f32.mrf.mxu0
        %v504 = vpop.f32.mrf.mxu0
        %v505 = vadd.f32 0.0, %v504
        %v506 = vpop.f32.mrf.mxu0
        %507 = vmatprep.mubr.bf16.mxu0 0
        %508 = vmatmul.mubr.bf16.gmra.mxu0 %v353
        %v509 = vpop.f32.mrf.mxu0
        %v510 = vadd.f32 0.0, %v509
        %v511 = vpop.f32.mrf.mxu0
        %v512 = vpop.f32.mrf.mxu0
        %v513 = vadd.f32 0.0, %v512
        %v514 = vpop.f32.mrf.mxu0
        %515 = vmatprep.mubr.bf16.mxu0 0
        %516 = vmatmul.mubr.bf16.gmra.mxu0 %v354
        %v517 = vpop.f32.mrf.mxu0
        %v518 = vadd.f32 0.0, %v517
        %v519 = vpop.f32.mrf.mxu0
        %v520 = vpop.f32.mrf.mxu0
        %v521 = vadd.f32 0.0, %v520
        %v522 = vpop.f32.mrf.mxu0
        %523 = vmatprep.mubr.bf16.mxu0 0
        %524 = vmatmul.mubr.bf16.gmra.mxu0 %v355
        %v525 = vpop.f32.mrf.mxu0
        %v526 = vadd.f32 0.0, %v525
        %v527 = vpop.f32.mrf.mxu0
        %v528 = vpop.f32.mrf.mxu0
        %v529 = vadd.f32 0.0, %v528
        %v530 = vpop.f32.mrf.mxu0
        %531 = vmatprep.mubr.bf16.mxu0 0
        %532 = vmatmul.mubr.bf16.gmra.mxu0 %v356
        %v533 = vpop.f32.mrf.mxu0
        %v534 = vadd.f32 0.0, %v533
        %v535 = vpop.f32.mrf.mxu0
        %v536 = vpop.f32.mrf.mxu0
        %v537 = vadd.f32 0.0, %v536
        %v538 = vpop.f32.mrf.mxu0
        %539 = vmatprep.mubr.bf16.mxu0 0
        %540 = vmatmul.mubr.bf16.gmra.mxu0 %v357
        %v541 = vpop.f32.mrf.mxu0
        %v542 = vadd.f32 0.0, %v541
        %v543 = vpop.f32.mrf.mxu0
        %v544 = vpop.f32.mrf.mxu0
        %v545 = vadd.f32 0.0, %v544
        %v546 = vpop.f32.mrf.mxu0
        %547 = vmatprep.mubr.bf16.mxu0 0
        %548 = vmatmul.mubr.bf16.gmra.mxu0 %v358
        %v549 = vpop.f32.mrf.mxu0
        %v550 = vadd.f32 0.0, %v549
        %v551 = vpop.f32.mrf.mxu0
        %v552 = vpop.f32.mrf.mxu0
        %v553 = vadd.f32 0.0, %v552
        %v554 = vpop.f32.mrf.mxu0
        %555 = vmatprep.mubr.bf16.mxu0 0
        %556 = vmatmul.mubr.bf16.gmra.mxu0 %v359
        %v557 = vpop.f32.mrf.mxu0
        %v558 = vadd.f32 0.0, %v557
        %v559 = vpop.f32.mrf.mxu0
        %v560 = vpop.f32.mrf.mxu0
        %v561 = vadd.f32 0.0, %v560
        %v562 = vpop.f32.mrf.mxu0
        %563 = vmatprep.mubr.bf16.mxu0 0
        %564 = vmatmul.mubr.bf16.gmra.mxu0 %v360
        %v565 = vpop.f32.mrf.mxu0
        %v566 = vadd.f32 0.0, %v565
        %v567 = vpop.f32.mrf.mxu0
        %v568 = vpop.f32.mrf.mxu0
        %v569 = vadd.f32 0.0, %v568
        %v570 = vpop.f32.mrf.mxu0
        %571 = vmatprep.mubr.bf16.mxu0 0
        %572 = vmatmul.mubr.bf16.gmra.mxu0 %v361
        %v573 = vpop.f32.mrf.mxu0
        %v574 = vadd.f32 0.0, %v573
        %v575 = vpop.f32.mrf.mxu0
        %v576 = vpop.f32.mrf.mxu0
        %v577 = vadd.f32 0.0, %v576
        %v578 = vpop.f32.mrf.mxu0
        %579 = vmatprep.mubr.bf16.mxu0 0
        %580 = vmatmul.mubr.bf16.gmra.mxu0 %v362
        %v581 = vpop.f32.mrf.mxu0
        %v582 = vadd.f32 0.0, %v581
        %v583 = vpop.f32.mrf.mxu0
        %v584 = vpop.f32.mrf.mxu0
        %v585 = vadd.f32 0.0, %v584
        %v586 = vpop.f32.mrf.mxu0
        %587 = vdwg.mxu0
        %s588 = sld [smem:[#allocation2]]
        %v589 = vstv %s588
        %v590 = vmul.f32 %v462, %v589
        %v591 = vmul.f32 %v465, %v589
        %v592 = vmul.f32 %v470, %v589
        %v593 = vmul.f32 %v473, %v589
        %v594 = vmul.f32 %v478, %v589
        %v595 = vmul.f32 %v481, %v589
        %v596 = vmul.f32 %v486, %v589
        %v597 = vmul.f32 %v489, %v589
        %v598 = vmul.f32 %v494, %v589
        %v599 = vmul.f32 %v497, %v589
        %v600 = vmul.f32 %v502, %v589
        %v601 = vmul.f32 %v505, %v589
        %v602 = vmul.f32 %v510, %v589
        %v603 = vmul.f32 %v513, %v589
        %v604 = vmul.f32 %v518, %v589
        %v605 = vmul.f32 %v521, %v589
        %v606 = vmul.f32 %v526, %v589
        %v607 = vmul.f32 %v529, %v589
        %v608 = vmul.f32 %v534, %v589
        %v609 = vmul.f32 %v537, %v589
        %v610 = vmul.f32 %v542, %v589
        %v611 = vmul.f32 %v545, %v589
        %v612 = vmul.f32 %v550, %v589
        %v613 = vmul.f32 %v553, %v589
        %v614 = vmul.f32 %v558, %v589
        %v615 = vmul.f32 %v561, %v589
        %v616 = vmul.f32 %v566, %v589
        %v617 = vmul.f32 %v569, %v589
        %v618 = vmul.f32 %v574, %v589
        %v619 = vmul.f32 %v577, %v589
        %v620 = vmul.f32 %v582, %v589
        %v621 = vmul.f32 %v585, %v589
        %v622 = vld [vmem:[%s2] sm:$0x1]
        %v624 = vlaneseq
        %v625 = vshrl.u32 %v624, 7
        %v626 = vsub.s32 0, %v625
        %v627 = vrot.slane %v622, %v626
        %v629 = vadd.f32 %v590, %v627
        %v630 = vadd.f32 %v591, %v627
        %v631 = vadd.f32 %v592, %v627
        %v632 = vadd.f32 %v593, %v627
        %v633 = vadd.f32 %v594, %v627
        %v634 = vadd.f32 %v595, %v627
        %v635 = vadd.f32 %v596, %v627
        %v636 = vadd.f32 %v597, %v627
        %v637 = vadd.f32 %v598, %v627
        %v638 = vadd.f32 %v599, %v627
        %v639 = vadd.f32 %v600, %v627
        %v640 = vadd.f32 %v601, %v627
        %v641 = vadd.f32 %v602, %v627
        %v642 = vadd.f32 %v603, %v627
        %v643 = vadd.f32 %v604, %v627
        %v644 = vadd.f32 %v605, %v627
        %v645 = vadd.f32 %v606, %v627
        %v646 = vadd.f32 %v607, %v627
        %v647 = vadd.f32 %v608, %v627
        %v648 = vadd.f32 %v609, %v627
        %v649 = vadd.f32 %v610, %v627
        %v650 = vadd.f32 %v611, %v627
        %v651 = vadd.f32 %v612, %v627
        %v652 = vadd.f32 %v613, %v627
        %v653 = vadd.f32 %v614, %v627
        %v654 = vadd.f32 %v615, %v627
        %v655 = vadd.f32 %v616, %v627
        %v656 = vadd.f32 %v617, %v627
        %v657 = vadd.f32 %v618, %v627
        %v658 = vadd.f32 %v619, %v627
        %v659 = vadd.f32 %v620, %v627
        %v660 = vadd.f32 %v621, %v627
        %661 = vst [vmem:[%s231] sm:$0xff] %v629
        %662 = vst [vmem:[%s231 + $0x8] sm:$0xff] %v630
        %663 = vst [vmem:[%s231 + $0x10] sm:$0xff] %v631
        %664 = vst [vmem:[%s231 + $0x18] sm:$0xff] %v632
        %665 = vst [vmem:[%s231 + $0x20] sm:$0xff] %v633
        %666 = vst [vmem:[%s231 + $0x28] sm:$0xff] %v634
        %667 = vst [vmem:[%s231 + $0x30] sm:$0xff] %v635
        %668 = vst [vmem:[%s231 + $0x38] sm:$0xff] %v636
        %669 = vst [vmem:[%s231 + $0x40] sm:$0xff] %v637
        %670 = vst [vmem:[%s231 + $0x48] sm:$0xff] %v638
        %671 = vst [vmem:[%s231 + $0x50] sm:$0xff] %v639
        %672 = vst [vmem:[%s231 + $0x58] sm:$0xff] %v640
        %673 = vst [vmem:[%s231 + $0x60] sm:$0xff] %v641
        %674 = vst [vmem:[%s231 + $0x68] sm:$0xff] %v642
        %675 = vst [vmem:[%s231 + $0x70] sm:$0xff] %v643
        %676 = vst [vmem:[%s231 + $0x78] sm:$0xff] %v644
        %677 = vst [vmem:[%s231 + $0x80] sm:$0xff] %v645
        %678 = vst [vmem:[%s231 + $0x88] sm:$0xff] %v646
        %679 = vst [vmem:[%s231 + $0x90] sm:$0xff] %v647
        %680 = vst [vmem:[%s231 + $0x98] sm:$0xff] %v648
        %681 = vst [vmem:[%s231 + $0xa0] sm:$0xff] %v649
        %682 = vst [vmem:[%s231 + $0xa8] sm:$0xff] %v650
        %683 = vst [vmem:[%s231 + $0xb0] sm:$0xff] %v651
        %684 = vst [vmem:[%s231 + $0xb8] sm:$0xff] %v652
        %685 = vst [vmem:[%s231 + $0xc0] sm:$0xff] %v653
        %686 = vst [vmem:[%s231 + $0xc8] sm:$0xff] %v654
        %687 = vst [vmem:[%s231 + $0xd0] sm:$0xff] %v655
        %688 = vst [vmem:[%s231 + $0xd8] sm:$0xff] %v656
        %689 = vst [vmem:[%s231 + $0xe0] sm:$0xff] %v657
        %690 = vst [vmem:[%s231 + $0xe8] sm:$0xff] %v658
        %691 = vst [vmem:[%s231 + $0xf0] sm:$0xff] %v659
        %692 = vst [vmem:[%s231 + $0xf8] sm:$0xff] %v660
        %s693 = sand.u32 %s120, 1
        %s694 = scalar_lea.sflag [#allocation5], %s693
        %s695 = sand.u32 %s120, 1
        %s696 = smul.addr %s695, 256
        %s697 = scalar_lea.vmem [#allocation8], %s696
        // Predicated region
        $region45: #{tpu_custom_call.1} parent=35 // pred_check
          %p698 = pneg %p130
        $region46: #{tpu_custom_call.1} parent=35 // pred_check_branch
          %700 = sbr.rel (%p698) target = $region48
        $region47: #{tpu_custom_call.1} parent=35 // pred_region
          %s701 = smul.u32 32, %s23
          %s703 = ssub.s32 4096, 4096
          %704 = vsyncadd %s694, %s703
          %s705 = smul.addr %s701, 128
          %s706 = scalar_lea.hbm %s4, %s705
          %s707 = sshll.u32 %s697, 4
          %s708 = int_to_ptr.vmem [resolvable:$true] %s707
          %713 = dma.vmem_to_hbm [thread:$0]  %s708, 4096, %s706, %s694, 128, 128, 8
        $region48: #{tpu_custom_call.1} parent=35 // pred_fallthru
          _
      $region36: #{tpu_custom_call.1} parent=5 // pred_fallthru
        _
      %p714 = scmp.le.s32.totalorder 2, %s18
      // Predicated region
      $region49: #{tpu_custom_call.1} parent=5 // pred_check
        %p715 = pneg %p714
      $region50: #{tpu_custom_call.1} parent=5 // pred_check_branch
        %717 = sbr.rel (%p715) target = $region52
      $region51: #{tpu_custom_call.1} parent=5 // pred_region
        %s718 = ssub.s32 %s18, 2
        // Predicated region
        $region53: #{tpu_custom_call.1} parent=51 // pred_check
          %p719 = pneg %p136
        $region54: #{tpu_custom_call.1} parent=51 // pred_check_branch
          %721 = sbr.rel (%p719) target = $region56
        $region55: #{tpu_custom_call.1} parent=51 // pred_region
          %s722 = sand.u32 %s121, 1
          %s723 = scalar_lea.sflag [#allocation5], %s722
          %s724 = sand.u32 %s121, 1
          %s725 = smul.addr %s724, 256
          %s726 = scalar_lea.vmem [#allocation8], %s725
          %727 = dma.done %s723, 4096
        $region56: #{tpu_custom_call.1} parent=51 // pred_fallthru
          _
      $region52: #{tpu_custom_call.1} parent=5 // pred_fallthru
        _
    $region6: #{tpu_custom_call.1} parent=1 // loop_footer
      %s22 = sadd.s32 1, %s18
    $region7: #{tpu_custom_call.1} parent=1 // loop_footer_branch
      %17 = sbr.rel target = $region3
    $region8: #{tpu_custom_call.1} parent=1 // loop_exit
      _
    %728 = vsyncpa [#allocation4], 1
    %s729 = scalar_lea.sflag [#allocation4], 1
    %730 = vsyncpa %s729, 1
    %731 = vsyncpa [#allocation7], 1
    %732 = vsyncpa [#allocation5], 1
    %s733 = scalar_lea.sflag [#allocation5], 1
    %734 = vsyncpa %s733, 1

</llo_original>
